<compile_context>
chip_gen: v5e
topology: v5e:2x2
jax: 0.10.0
libtpu: 0.0.40
codegen_flags: <defaults>
</compile_context>

<pallas_src>
import functools

import jax
import jax.numpy as jnp
from jax.experimental import pallas as pl
from jax.experimental.pallas import tpu as pltpu

EPS = 1e-5


# ---------------------------------------------------------------------------
# Fused kernel
# ---------------------------------------------------------------------------
def _fused_decoder_kernel(x_ref, m_ref, w1_ref, b1_ref, wu_ref, bu_ref,
                          w3_ref, b3_ref, o_ref, *, W, C4, BB):
    """A block of BB images end-to-end.  Layout: channels in sublanes,
    flattened spatial (lane m = p*W + q, zero-padded to Mp) in lanes.

      x_ref : (BB, Cin, Mp)      m_ref : (2, Mp)   f32 0/1 masks (col ok, row ok)
      w1_ref: (C4, Cin)          b1_ref: (C4, 1)
      wu_ref: (4, 4*C4, C4)      bu_ref: (4*C4, 1)   (tap-group column blocks)
      w3_ref: (4*nf, 4*C4)       b3_ref: (4*nf, 1)
      o_ref : (BB, 4*nf, Mp)     row r = (2*dh + dw)*nf + cout   (phase-major)
    """
    f32 = jnp.float32
    Mp = x_ref.shape[-1]
    mdt = w1_ref.dtype                      # matmul operand dtype (bf16 or f32)

    # ---- batch-invariant loads, hoisted out of the image loop --------------
    masks = m_ref[...]
    can_c = masks[0:1, :] != 0.0            # q < W-1 : (p, q+1) neighbour exists
    can_r = masks[1:2, :] != 0.0            # p < H-1 : (p+1, q) neighbour exists
    can_rc = jnp.logical_and(can_c, can_r)

    w1 = w1_ref[...]
    b1 = b1_ref[...]
    wu0 = wu_ref[0]
    wu1 = wu_ref[1]
    wu2 = wu_ref[2]
    wu3 = wu_ref[3]
    bu = bu_ref[...]
    w3 = w3_ref[...]
    b3 = b3_ref[...]

    for b in range(BB):                      # static unroll; BB is small
        # ---- stage 1: 1x1 conv (BN folded) + ReLU ---------------------------
        x = x_ref[b].astype(mdt)                                     # (Cin, Mp)
        y1 = jnp.dot(w1, x, preferred_element_type=f32)
        y1 = jnp.maximum(y1 + b1, 0.0)                               # (C4, Mp) f32

        # ---- tap groups for the sub-pixel stride-2 transposed conv ---------
        # tap1 = y1[p, q+1], tap2 = y1[p+1, q], tap3 = y1[p+1, q+1]
        # lane m = p*W + q, so "+1 col" = lane+1 and "+1 row" = lane+W.
        # pltpu.roll is circular; every wrapped / cross-row / padded lane is
        # zeroed by the masks, reproducing the implicit zero padding.
        t1 = jnp.where(can_c, pltpu.roll(y1, Mp - 1, 1), 0.0)
        t2 = jnp.where(can_r, pltpu.roll(y1, Mp - W, 1), 0.0)
        t3 = jnp.where(can_rc, pltpu.roll(y1, Mp - W - 1, 1), 0.0)

        # ---- stage 2: all 4 phases of the ConvTranspose, 4 accumulated dots -
        y2 = (jnp.dot(wu0, y1.astype(mdt), preferred_element_type=f32)
              + jnp.dot(wu1, t1.astype(mdt), preferred_element_type=f32)
              + jnp.dot(wu2, t2.astype(mdt), preferred_element_type=f32)
              + jnp.dot(wu3, t3.astype(mdt), preferred_element_type=f32))
        y2 = jnp.maximum(y2 + bu, 0.0)                               # (4*C4, Mp)

        # ---- stage 3: 1x1 conv (block-diag over phases, BN folded) + ReLU ---
        y3 = jnp.dot(w3, y2.astype(mdt), preferred_element_type=f32)
        y3 = jnp.maximum(y3 + b3, 0.0)                               # (4*nf, Mp)

        o_ref[b] = y3.astype(o_ref.dtype)


# ---------------------------------------------------------------------------
# Module wrapper
# ---------------------------------------------------------------------------
def _fold_bn(conv_bias, gamma, beta, rm, rv):
    s = gamma / jnp.sqrt(rv + EPS)
    b = (conv_bias - rm) * s + beta
    return s, b


def _pick_images_per_step(n, max_per_step=8):
    """Amortize the ~0.35us per-grid-step overhead over several images, but
    keep >= 2 grid steps when N >= 2 so both v7x TensorCores get work."""
    if n <= 1:
        return 1
    return max(1, min(max_per_step, n // 2))


def decoder_bottleneck_forward(x_nchw, p, *, use_bf16=True, images_per_step=None,
                               max_images_per_step=8):
    N, Cin, H, W = x_nchw.shape
    C4 = p["w1"].shape[0]
    nf = p["w3"].shape[0]
    M = H * W
    Mp = ((M + 127) // 128) * 128            # lane-dense (128-multiple) spatial dim
    f32 = jnp.float32
    cdt = jnp.bfloat16 if use_bf16 else f32  # matmul operand dtype

    # ---- fold eval-mode BN into the conv weights / biases -------------------
    s1, b1v = _fold_bn(p["b1"], p["g1"], p["beta1"], p["rm1"], p["rv1"])
    w1 = (s1[:, None] * p["w1"][:, :, 0, 0]).astype(cdt)            # (C4, Cin)
    b1 = b1v[:, None].astype(f32)                                   # (C4, 1)

    su, buv = _fold_bn(p["bt"], p["gu"], p["betau"], p["rmu"], p["rvu"])
    wt = p["wt"]                                                    # (Cin=C4, Cout=C4, 3, 3)

    def tap(kh, kw):                                                # (Cout, Cin)
        return jnp.transpose(wt[:, :, kh, kw])

    Z0 = jnp.zeros((C4, C4), wt.dtype)
    # Row blocks = output phases (dh, dw) in order (0,0),(0,1),(1,0),(1,1);
    # column blocks = tap groups [y(p,q), y(p,q+1), y(p+1,q), y(p+1,q+1)]
    # (derived from oh = 2*ih - 1 + kh, ow = 2*iw - 1 + kw).
    wu = jnp.concatenate([
        jnp.concatenate([tap(1, 1), Z0,        Z0,        Z0       ], axis=1),
        jnp.concatenate([tap(1, 2), tap(1, 0), Z0,        Z0       ], axis=1),
        jnp.concatenate([tap(2, 1), Z0,        tap(0, 1), Z0       ], axis=1),
        jnp.concatenate([tap(2, 2), tap(2, 0), tap(0, 2), tap(0, 0)], axis=1),
    ], axis=0)                                                      # (4*C4, 4*C4)
    wu = jnp.tile(su, 4)[:, None] * wu
    # Split into the 4 tap-group column blocks (stacked on a leading axis).
    wu_blocks = jnp.stack(
        [wu[:, g * C4:(g + 1) * C4] for g in range(4)], axis=0).astype(cdt)
    bu = jnp.tile(buv, 4)[:, None].astype(f32)                      # (4*C4, 1)

    s3, b3v = _fold_bn(p["b3"], p["g3"], p["beta3"], p["rm3"], p["rv3"])
    w3 = s3[:, None] * p["w3"][:, :, 0, 0]                          # (nf, C4)
    w3 = jnp.kron(jnp.eye(4, dtype=w3.dtype), w3).astype(cdt)       # (4*nf, 4*C4)
    b3 = jnp.tile(b3v, 4)[:, None].astype(f32)                      # (4*nf, 1)

    # ---- hoisted roll masks (depend only on H, W, padding) ------------------
    lanes = jnp.arange(Mp, dtype=jnp.int32)
    real = lanes < M
    can_c = ((lanes % W) < (W - 1)) & real                          # (p, q+1) exists
    can_r = (lanes < (H - 1) * W) & real                            # (p+1, q) exists
    masks = jnp.stack([can_c, can_r], axis=0).astype(f32)           # (2, Mp)

    # ---- input: NCHW with flattened (lane-padded) spatial -------------------
    x2d = x_nchw.reshape(N, Cin, M)
    if Mp != M:
        x2d = jnp.pad(x2d, ((0, 0), (0, 0), (0, Mp - M)))

    BB = images_per_step or _pick_images_per_step(N, max_images_per_step)
    Np = ((N + BB - 1) // BB) * BB
    if Np != N:
        x2d = jnp.pad(x2d, ((0, Np - N), (0, 0), (0, 0)))

    kernel = functools.partial(_fused_decoder_kernel, W=W, C4=C4, BB=BB)
    out = pl.pallas_call(
        kernel,
        out_shape=jax.ShapeDtypeStruct((Np, 4 * nf, Mp), x_nchw.dtype),
        grid_spec=pltpu.PrefetchScalarGridSpec(
            num_scalar_prefetch=0,
            grid=(Np // BB,),
            in_specs=[
                pl.BlockSpec((BB, Cin, Mp), lambda g: (g, 0, 0)),
                pl.BlockSpec((2, Mp), lambda g: (0, 0)),
                pl.BlockSpec((C4, Cin), lambda g: (0, 0)),
                pl.BlockSpec((C4, 1), lambda g: (0, 0)),
                pl.BlockSpec((4, 4 * C4, C4), lambda g: (0, 0, 0)),
                pl.BlockSpec((4 * C4, 1), lambda g: (0, 0)),
                pl.BlockSpec((4 * nf, 4 * C4), lambda g: (0, 0)),
                pl.BlockSpec((4 * nf, 1), lambda g: (0, 0)),
            ],
            out_specs=pl.BlockSpec((BB, 4 * nf, Mp), lambda g: (g, 0, 0)),
        ),
        compiler_params=pltpu.CompilerParams(
            dimension_semantics=("parallel",)),
    )(x2d, masks, w1, b1, wu_blocks, bu, w3, b3)

    # Pixel shuffle (cheap layout plumbing on the final small output only):
    # (n, (2*dh+dw)*nf + c, p*W + q)  ->  (n, c, 2p+dh, 2q+dw)
    out = out[:N, :, :M]
    y = out.reshape(N, 2, 2, nf, H, W)
    y = jnp.transpose(y, (0, 3, 4, 1, 5, 2)).reshape(N, nf, 2 * H, 2 * W)
    return y


# ---------------------------------------------------------------------------
# Pure-JAX reference (independent math path) for validation
# ---------------------------------------------------------------------------
def _bn_relu_ref(x, gamma, beta, rm, rv):
    y = (x - rm) / jnp.sqrt(rv + EPS) * gamma + beta
    return jnp.maximum(y, 0.0)


def reference_forward(x_nchw, p):
    x = jnp.transpose(x_nchw, (0, 2, 3, 1))
    # conv1
    y = jnp.einsum("nhwc,dc->nhwd", x, p["w1"][:, :, 0, 0]) + p["b1"]
    y = _bn_relu_ref(y, p["g1"], p["beta1"], p["rm1"], p["rv1"])
    # transposed conv (direct scatter-add formulation)
    N, H, W, C = y.shape
    Ho, Wo = 2 * H, 2 * W
    Cout = p["wt"].shape[1]
    yext = jnp.zeros((N, Ho + 1, Wo + 1, Cout), y.dtype)
    for kh in range(3):
        for kw in range(3):
            contrib = jnp.einsum("nhwc,cd->nhwd", y, p["wt"][:, :, kh, kw])
            yext = yext.at[:, kh:kh + 2 * H:2, kw:kw + 2 * W:2, :].add(contrib)
    y = yext[:, 1:Ho + 1, 1:Wo + 1, :] + p["bt"]
    y = _bn_relu_ref(y, p["gu"], p["betau"], p["rmu"], p["rvu"])
    # conv3
    y = jnp.einsum("nhwc,dc->nhwd", y, p["w3"][:, :, 0, 0]) + p["b3"]
    y = _bn_relu_ref(y, p["g3"], p["beta3"], p["rm3"], p["rv3"])
    return jnp.transpose(y, (0, 3, 1, 2))


def make_params(key, Cin, nf):
    C4 = Cin // 4
    ks = jax.random.split(key, 18)
    f32 = jnp.float32
    nrm = lambda k, s: 0.1 * jax.random.normal(k, s, f32)
    uni = lambda k, s, lo, hi: jax.random.uniform(k, s, f32, lo, hi)
    return dict(
        # conv1: Conv2d(Cin, C4, 1)
        w1=nrm(ks[0], (C4, Cin, 1, 1)), b1=nrm(ks[1], (C4,)),
        g1=uni(ks[2], (C4,), 0.8, 1.2), beta1=nrm(ks[3], (C4,)),
        rm1=nrm(ks[4], (C4,)), rv1=uni(ks[5], (C4,), 0.5, 1.5),
        # up: ConvTranspose2d(C4, C4, 3, stride=2, padding=1, output_padding=1)
        wt=nrm(ks[6], (C4, C4, 3, 3)), bt=nrm(ks[7], (C4,)),
        gu=uni(ks[8], (C4,), 0.8, 1.2), betau=nrm(ks[9], (C4,)),
        rmu=nrm(ks[10], (C4,)), rvu=uni(ks[11], (C4,), 0.5, 1.5),
        # conv3: Conv2d(C4, nf, 1)
        w3=nrm(ks[12], (nf, C4, 1, 1)), b3=nrm(ks[13], (nf,)),
        g3=uni(ks[14], (nf,), 0.8, 1.2), beta3=nrm(ks[15], (nf,)),
        rm3=nrm(ks[16], (nf,)), rv3=uni(ks[17], (nf,), 0.5, 1.5),
    )


if __name__ == "__main__":
    key = jax.random.PRNGKey(0)
    kp1, kx1, kp2, kx2 = jax.random.split(key, 4)

    # ---- case 1: N=2, Cin=16, 16x16, n_filters=8 (128-aligned spatial) ------
    params = make_params(kp1, 16, 8)
    x = jax.random.normal(kx1, (2, 16, 16, 16), jnp.float32)
    ref = reference_forward(x, params)

    # bf16 matmul path (default)
    out_bf16 = jax.block_until_ready(
        jax.jit(functools.partial(decoder_bottleneck_forward, p=params,
                                  use_bf16=True))(x))
    assert out_bf16.shape == (2, 8, 32, 32), out_bf16.shape
    err = float(jnp.max(jnp.abs(out_bf16 - ref)))
    assert jnp.allclose(out_bf16, ref, atol=5e-2, rtol=5e-2), err

    # f32 matmul path (tight tolerance)
    out_f32 = jax.block_until_ready(
        jax.jit(functools.partial(decoder_bottleneck_forward, p=params,
                                  use_bf16=False))(x))
    err = float(jnp.max(jnp.abs(out_f32 - ref)))
    assert jnp.allclose(out_f32, ref, atol=1e-4, rtol=1e-4), err

    # ---- case 2: odd batch, non-128-multiple spatial, 2 images / grid step --
    params2 = make_params(kp2, 8, 4)
    x2 = jax.random.normal(kx2, (3, 8, 10, 10), jnp.float32)
    out2 = jax.block_until_ready(
        jax.jit(functools.partial(decoder_bottleneck_forward, p=params2,
                                  use_bf16=False, images_per_step=2))(x2))
    assert out2.shape == (3, 4, 20, 20), out2.shape
    ref2 = reference_forward(x2, params2)
    err2 = float(jnp.max(jnp.abs(out2 - ref2)))
    assert jnp.allclose(out2, ref2, atol=1e-4, rtol=1e-4), err2

    print("KERNEL_OK")
</pallas_src>

<mosaic_0001>
module attributes {stable_mosaic.version = 11 : i64} {
  func.func @_fused_decoder_kernel(%arg0: i32, %arg1: memref<1x16x256xf32, #tpu.memory_space<vmem>>, %arg2: memref<2x256xf32, #tpu.memory_space<vmem>>, %arg3: memref<4x16xbf16, #tpu.memory_space<vmem>>, %arg4: memref<4x1xf32, #tpu.memory_space<vmem>>, %arg5: memref<4x16x4xbf16, #tpu.memory_space<vmem>>, %arg6: memref<16x1xf32, #tpu.memory_space<vmem>>, %arg7: memref<32x16xbf16, #tpu.memory_space<vmem>>, %arg8: memref<32x1xf32, #tpu.memory_space<vmem>>, %arg9: memref<1x32x256xf32, #tpu.memory_space<vmem>>) attributes {dimension_semantics = [#tpu.dimension_semantics<parallel>], iteration_bounds = array<i64: 2>, scalar_prefetch = 0 : i64, scratch_operands = 0 : i64, tpu.core_type = #tpu.core_type<tc>, window_params = [{transform_indices = @transform_0, window_bounds = array<i64: 1, 16, 256>}, {pipeline_mode = #tpu.pipeline_mode<synchronous>, transform_indices = @transform_1, window_bounds = array<i64: 2, 256>}, {pipeline_mode = #tpu.pipeline_mode<synchronous>, transform_indices = @transform_2, window_bounds = array<i64: 4, 16>}, {pipeline_mode = #tpu.pipeline_mode<synchronous>, transform_indices = @transform_3, window_bounds = array<i64: 4, 1>}, {pipeline_mode = #tpu.pipeline_mode<synchronous>, transform_indices = @transform_4, window_bounds = array<i64: 4, 16, 4>}, {pipeline_mode = #tpu.pipeline_mode<synchronous>, transform_indices = @transform_5, window_bounds = array<i64: 16, 1>}, {pipeline_mode = #tpu.pipeline_mode<synchronous>, transform_indices = @transform_6, window_bounds = array<i64: 32, 16>}, {pipeline_mode = #tpu.pipeline_mode<synchronous>, transform_indices = @transform_7, window_bounds = array<i64: 32, 1>}, {transform_indices = @transform_8, window_bounds = array<i64: 1, 32, 256>}]} {
    %c0 = arith.constant 0 : index
    %c0_0 = arith.constant 0 : index
    %0 = vector.load %arg2[%c0, %c0_0] : memref<2x256xf32, #tpu.memory_space<vmem>>, vector<2x256xf32>
    %1 = vector.extract_strided_slice %0 {offsets = [0, 0], sizes = [1, 256], strides = [1, 1]} : vector<2x256xf32> to vector<1x256xf32>
    %cst = arith.constant 0.000000e+00 : f32
    %2 = vector.broadcast %cst : f32 to vector<1x256xf32>
    %3 = arith.cmpf one, %1, %2 : vector<1x256xf32>
    %4 = vector.extract_strided_slice %0 {offsets = [1, 0], sizes = [1, 256], strides = [1, 1]} : vector<2x256xf32> to vector<1x256xf32>
    %cst_1 = arith.constant 0.000000e+00 : f32
    %5 = vector.broadcast %cst_1 : f32 to vector<1x256xf32>
    %6 = arith.cmpf one, %4, %5 : vector<1x256xf32>
    %7 = arith.andi %3, %6 : vector<1x256xi1>
    %c0_2 = arith.constant 0 : index
    %c0_3 = arith.constant 0 : index
    %8 = vector.load %arg3[%c0_2, %c0_3] : memref<4x16xbf16, #tpu.memory_space<vmem>>, vector<4x16xbf16>
    %c0_4 = arith.constant 0 : index
    %c0_5 = arith.constant 0 : index
    %9 = vector.load %arg4[%c0_4, %c0_5] : memref<4x1xf32, #tpu.memory_space<vmem>>, vector<4x1xf32>
    %c0_6 = arith.constant 0 : index
    %c0_7 = arith.constant 0 : index
    %c0_8 = arith.constant 0 : index
    %10 = vector.load %arg5[%c0_6, %c0_7, %c0_8] : memref<4x16x4xbf16, #tpu.memory_space<vmem>>, vector<1x16x4xbf16>
    %11 = vector.shape_cast %10 : vector<1x16x4xbf16> to vector<16x4xbf16>
    %c1 = arith.constant 1 : index
    %c0_9 = arith.constant 0 : index
    %c0_10 = arith.constant 0 : index
    %12 = vector.load %arg5[%c1, %c0_9, %c0_10] : memref<4x16x4xbf16, #tpu.memory_space<vmem>>, vector<1x16x4xbf16>
    %13 = vector.shape_cast %12 : vector<1x16x4xbf16> to vector<16x4xbf16>
    %c2 = arith.constant 2 : index
    %c0_11 = arith.constant 0 : index
    %c0_12 = arith.constant 0 : index
    %14 = vector.load %arg5[%c2, %c0_11, %c0_12] : memref<4x16x4xbf16, #tpu.memory_space<vmem>>, vector<1x16x4xbf16>
    %15 = vector.shape_cast %14 : vector<1x16x4xbf16> to vector<16x4xbf16>
    %c3 = arith.constant 3 : index
    %c0_13 = arith.constant 0 : index
    %c0_14 = arith.constant 0 : index
    %16 = vector.load %arg5[%c3, %c0_13, %c0_14] : memref<4x16x4xbf16, #tpu.memory_space<vmem>>, vector<1x16x4xbf16>
    %17 = vector.shape_cast %16 : vector<1x16x4xbf16> to vector<16x4xbf16>
    %c0_15 = arith.constant 0 : index
    %c0_16 = arith.constant 0 : index
    %18 = vector.load %arg6[%c0_15, %c0_16] : memref<16x1xf32, #tpu.memory_space<vmem>>, vector<16x1xf32>
    %c0_17 = arith.constant 0 : index
    %c0_18 = arith.constant 0 : index
    %19 = vector.load %arg7[%c0_17, %c0_18] : memref<32x16xbf16, #tpu.memory_space<vmem>>, vector<32x16xbf16>
    %c0_19 = arith.constant 0 : index
    %c0_20 = arith.constant 0 : index
    %20 = vector.load %arg8[%c0_19, %c0_20] : memref<32x1xf32, #tpu.memory_space<vmem>>, vector<32x1xf32>
    %c0_21 = arith.constant 0 : index
    %c0_22 = arith.constant 0 : index
    %c0_23 = arith.constant 0 : index
    %21 = vector.load %arg1[%c0_21, %c0_22, %c0_23] : memref<1x16x256xf32, #tpu.memory_space<vmem>>, vector<1x16x256xf32>
    %22 = vector.shape_cast %21 : vector<1x16x256xf32> to vector<16x256xf32>
    %23 = arith.truncf %22 : vector<16x256xf32> to vector<16x256xbf16>
    %cst_24 = arith.constant dense<0.000000e+00> : vector<4x256xf32>
    %24 = tpu.matmul %8, %23, %cst_24 {dimension_numbers = #tpu.dot_dimension_numbers<[1], [0], [0], [1], [0, 0, 1, 1], [], []>} : vector<4x16xbf16>, vector<16x256xbf16>, vector<4x256xf32> -> vector<4x256xf32>
    %25 = vector.broadcast %9 : vector<4x1xf32> to vector<4x256xf32>
    %26 = arith.addf %24, %25 : vector<4x256xf32>
    %cst_25 = arith.constant 0.000000e+00 : f32
    %27 = vector.broadcast %cst_25 : f32 to vector<4x256xf32>
    %28 = arith.maximumf %26, %27 : vector<4x256xf32>
    %c255_i32 = arith.constant 255 : i32
    %29 = tpu.dynamic_rotate %28 by %c255_i32 dim 1 : vector<4x256xf32>, i32 -> vector<4x256xf32>
    %cst_26 = arith.constant 0.000000e+00 : f32
    %30 = vector.shape_cast %3 : vector<1x256xi1> to vector<1x256xi1>
    %31 = vector.broadcast %30 : vector<1x256xi1> to vector<4x256xi1>
    %32 = vector.broadcast %cst_26 : f32 to vector<4x256xf32>
    %33 = arith.select %31, %29, %32 : vector<4x256xi1>, vector<4x256xf32>
    %c240_i32 = arith.constant 240 : i32
    %34 = tpu.dynamic_rotate %28 by %c240_i32 dim 1 : vector<4x256xf32>, i32 -> vector<4x256xf32>
    %cst_27 = arith.constant 0.000000e+00 : f32
    %35 = vector.shape_cast %6 : vector<1x256xi1> to vector<1x256xi1>
    %36 = vector.broadcast %35 : vector<1x256xi1> to vector<4x256xi1>
    %37 = vector.broadcast %cst_27 : f32 to vector<4x256xf32>
    %38 = arith.select %36, %34, %37 : vector<4x256xi1>, vector<4x256xf32>
    %c239_i32 = arith.constant 239 : i32
    %39 = tpu.dynamic_rotate %28 by %c239_i32 dim 1 : vector<4x256xf32>, i32 -> vector<4x256xf32>
    %cst_28 = arith.constant 0.000000e+00 : f32
    %40 = vector.shape_cast %7 : vector<1x256xi1> to vector<1x256xi1>
    %41 = vector.broadcast %40 : vector<1x256xi1> to vector<4x256xi1>
    %42 = vector.broadcast %cst_28 : f32 to vector<4x256xf32>
    %43 = arith.select %41, %39, %42 : vector<4x256xi1>, vector<4x256xf32>
    %44 = arith.truncf %28 : vector<4x256xf32> to vector<4x256xbf16>
    %cst_29 = arith.constant dense<0.000000e+00> : vector<16x256xf32>
    %45 = tpu.matmul %11, %44, %cst_29 {dimension_numbers = #tpu.dot_dimension_numbers<[1], [0], [0], [1], [0, 0, 1, 1], [], []>} : vector<16x4xbf16>, vector<4x256xbf16>, vector<16x256xf32> -> vector<16x256xf32>
    %46 = arith.truncf %33 : vector<4x256xf32> to vector<4x256xbf16>
    %cst_30 = arith.constant dense<0.000000e+00> : vector<16x256xf32>
    %47 = tpu.matmul %13, %46, %cst_30 {dimension_numbers = #tpu.dot_dimension_numbers<[1], [0], [0], [1], [0, 0, 1, 1], [], []>} : vector<16x4xbf16>, vector<4x256xbf16>, vector<16x256xf32> -> vector<16x256xf32>
    %48 = arith.addf %45, %47 : vector<16x256xf32>
    %49 = arith.truncf %38 : vector<4x256xf32> to vector<4x256xbf16>
    %cst_31 = arith.constant dense<0.000000e+00> : vector<16x256xf32>
    %50 = tpu.matmul %15, %49, %cst_31 {dimension_numbers = #tpu.dot_dimension_numbers<[1], [0], [0], [1], [0, 0, 1, 1], [], []>} : vector<16x4xbf16>, vector<4x256xbf16>, vector<16x256xf32> -> vector<16x256xf32>
    %51 = arith.addf %48, %50 : vector<16x256xf32>
    %52 = arith.truncf %43 : vector<4x256xf32> to vector<4x256xbf16>
    %cst_32 = arith.constant dense<0.000000e+00> : vector<16x256xf32>
    %53 = tpu.matmul %17, %52, %cst_32 {dimension_numbers = #tpu.dot_dimension_numbers<[1], [0], [0], [1], [0, 0, 1, 1], [], []>} : vector<16x4xbf16>, vector<4x256xbf16>, vector<16x256xf32> -> vector<16x256xf32>
    %54 = arith.addf %51, %53 : vector<16x256xf32>
    %55 = vector.broadcast %18 : vector<16x1xf32> to vector<16x256xf32>
    %56 = arith.addf %54, %55 : vector<16x256xf32>
    %cst_33 = arith.constant 0.000000e+00 : f32
    %57 = vector.broadcast %cst_33 : f32 to vector<16x256xf32>
    %58 = arith.maximumf %56, %57 : vector<16x256xf32>
    %59 = arith.truncf %58 : vector<16x256xf32> to vector<16x256xbf16>
    %cst_34 = arith.constant dense<0.000000e+00> : vector<32x256xf32>
    %60 = tpu.matmul %19, %59, %cst_34 {dimension_numbers = #tpu.dot_dimension_numbers<[1], [0], [0], [1], [0, 0, 1, 1], [], []>} : vector<32x16xbf16>, vector<16x256xbf16>, vector<32x256xf32> -> vector<32x256xf32>
    %61 = vector.broadcast %20 : vector<32x1xf32> to vector<32x256xf32>
    %62 = arith.addf %60, %61 : vector<32x256xf32>
    %cst_35 = arith.constant 0.000000e+00 : f32
    %63 = vector.broadcast %cst_35 : f32 to vector<32x256xf32>
    %64 = arith.maximumf %62, %63 : vector<32x256xf32>
    %c0_36 = arith.constant 0 : index
    %c0_37 = arith.constant 0 : index
    %c0_38 = arith.constant 0 : index
    %65 = vector.load %arg9[%c0_36, %c0_37, %c0_38] : memref<1x32x256xf32, #tpu.memory_space<vmem>>, vector<1x32x256xf32>
    %66 = vector.shape_cast %65 : vector<1x32x256xf32> to vector<32x256xf32>
    %67 = vector.shape_cast %64 : vector<32x256xf32> to vector<1x32x256xf32>
    tpu.vector_store %arg9[%c0_36, %c0_37, %c0_38], %67 {strides = array<i32>} : memref<1x32x256xf32, #tpu.memory_space<vmem>>, vector<1x32x256xf32>,
    return
  }
  func.func @transform_0(%arg0: i32) -> (i32, i32, i32) {
    %c0_i32 = arith.constant 0 : i32
    %c0_i32_0 = arith.constant 0 : i32
    %c0_i32_1 = arith.constant 0 : i32
    return %arg0, %c0_i32, %c0_i32_0 : i32, i32, i32
  }
  func.func @transform_1(%arg0: i32) -> (i32, i32) {
    %c0_i32 = arith.constant 0 : i32
    %c0_i32_0 = arith.constant 0 : i32
    %c0_i32_1 = arith.constant 0 : i32
    return %c0_i32, %c0_i32_0 : i32, i32
  }
  func.func @transform_2(%arg0: i32) -> (i32, i32) {
    %c0_i32 = arith.constant 0 : i32
    %c0_i32_0 = arith.constant 0 : i32
    %c0_i32_1 = arith.constant 0 : i32
    return %c0_i32, %c0_i32_0 : i32, i32
  }
  func.func @transform_3(%arg0: i32) -> (i32, i32) {
    %c0_i32 = arith.constant 0 : i32
    %c0_i32_0 = arith.constant 0 : i32
    %c0_i32_1 = arith.constant 0 : i32
    return %c0_i32, %c0_i32_0 : i32, i32
  }
  func.func @transform_4(%arg0: i32) -> (i32, i32, i32) {
    %c0_i32 = arith.constant 0 : i32
    %c0_i32_0 = arith.constant 0 : i32
    %c0_i32_1 = arith.constant 0 : i32
    %c0_i32_2 = arith.constant 0 : i32
    return %c0_i32, %c0_i32_0, %c0_i32_1 : i32, i32, i32
  }
  func.func @transform_5(%arg0: i32) -> (i32, i32) {
    %c0_i32 = arith.constant 0 : i32
    %c0_i32_0 = arith.constant 0 : i32
    %c0_i32_1 = arith.constant 0 : i32
    return %c0_i32, %c0_i32_0 : i32, i32
  }
  func.func @transform_6(%arg0: i32) -> (i32, i32) {
    %c0_i32 = arith.constant 0 : i32
    %c0_i32_0 = arith.constant 0 : i32
    %c0_i32_1 = arith.constant 0 : i32
    return %c0_i32, %c0_i32_0 : i32, i32
  }
  func.func @transform_7(%arg0: i32) -> (i32, i32) {
    %c0_i32 = arith.constant 0 : i32
    %c0_i32_0 = arith.constant 0 : i32
    %c0_i32_1 = arith.constant 0 : i32
    return %c0_i32, %c0_i32_0 : i32, i32
  }
  func.func @transform_8(%arg0: i32) -> (i32, i32, i32) {
    %c0_i32 = arith.constant 0 : i32
    %c0_i32_0 = arith.constant 0 : i32
    %c0_i32_1 = arith.constant 0 : i32
    return %arg0, %c0_i32, %c0_i32_0 : i32, i32, i32
  }
}

</mosaic_0001>

<llo_original>
// kernel: tile.14
$region0: #{tile.14}
  #allocation0 [shape = 's32[1]{0}', space=sflag, size = 0x4, scoped, tag = 'scoped memory for tile.14']
  %s0 = inlined_call_operand.vmem [shape: f32[4], index: 0, kind: input, shape index: {}]
  %s1 = inlined_call_operand.vmem [shape: f32[4,4], index: 1, kind: output, shape index: {}]
  // Predicated region
  $region2: #{tile.14} parent=0 // pred_check
    _
  $region3: #{tile.14} parent=0 // pred_check_branch
    %3 = sbr.rel (0) target = $region5
  $region4: #{tile.14} parent=0 // pred_region
    _
  $region5: #{tile.14} parent=0 // pred_fallthru
    _
  %v4 = vld [vmem:[%s0] ss:$0 sm:$0xff]
  %5 = vst [vmem:[%s1] sm:$0xf] %v4

// kernel: mul.31
$region0: #{mul.31}
  %s0 = inlined_call_operand.vmem [shape: f32[4,4], index: 0, kind: input, shape index: {}]
  %s1 = inlined_call_operand.vmem [shape: f32[16], index: 1, kind: output, shape index: {}]
  $region1: #{mul.31} parent=0
    #allocation0 [shape = 'u8[4096]{0}', space=vmem, size = 0x1000, scoped, tag = 'scoped mem for output reshape']
    #allocation1 [shape = 'u8[4096]{0}', space=vmem, size = 0x1000, scoped, tag = 'scoped mem for input reshape']
    %s3 = ssub.s32 16, 1
    %v4 = vld [vmem:[%s0] sm:%s3]
    %5 = vst [vmem:[#allocation1] sm:%s3] %v4
    %v6 = vld [vmem:[#allocation1] sm:$0x1]
    %vm7 = vcmask 31744
    %8 = vst.msk [vmem:[#allocation0] sm:$0x1] %vm7, %v6
    %s9 = scalar_lea.vmem [#allocation1], 3
    %v10 = vld [vmem:[%s9] sm:$0x1]
    %11 = vrot.lane.b32.xlu0 %v10, 12
    %v12 = vpop.permute.xlu0 %11
    %vm13 = vcmask 130144
    %14 = vst.msk [vmem:[#allocation0] sm:$0x1] %vm13, %v12
    %s15 = scalar_lea.vmem [#allocation1], 2
    %v16 = vld [vmem:[%s15] sm:$0x1]
    %17 = vrot.lane.b32.xlu0 %v16, 8
    %v18 = vpop.permute.xlu0 %17
    %vm19 = vcmask 97344
    %20 = vst.msk [vmem:[#allocation0] sm:$0x1] %vm19, %v18
    %s21 = scalar_lea.vmem [#allocation1], 1
    %v22 = vld [vmem:[%s21] sm:$0x1]
    %23 = vrot.lane.b32.xlu0 %v22, 4
    %v24 = vpop.permute.xlu0 %23
    %vm25 = vcmask 64544
    %26 = vst.msk [vmem:[#allocation0] sm:$0x1] %vm25, %v24
    %s28 = ssub.s32 2, 1
    %v29 = vld [vmem:[#allocation0] sm:%s28]
    %s31 = ssub.s32 2, 1
    %32 = vst [vmem:[%s1] sm:%s31] %v29

// kernel: tile.0
$region0: #{tile.0}
  %s0 = inlined_call_operand.vmem [shape: f32[4,4], index: 0, kind: input, shape index: {}]
  %s1 = inlined_call_operand.vmem [shape: f32[16,1], index: 1, kind: output, shape index: {}]
  $region1: #{tile.0} parent=0
    #allocation0 [shape = 'u8[4096]{0}', space=vmem, size = 0x1000, scoped, tag = 'scoped mem for input reshape']
    %s3 = ssub.s32 16, 1
    %v4 = vld [vmem:[%s0] sm:%s3]
    %5 = vst [vmem:[#allocation0] sm:%s3] %v4
    %v6 = vld [vmem:[#allocation0] sm:$0xf]
    %vm7 = vcmask 7168
    %8 = vst.msk [vmem:[%s1] ss:$4 sm:$0xf] %vm7, %v6
    %v9 = vld [vmem:[#allocation0] sm:$0xf]
    %10 = vrot.lane.b32.xlu0 %v9, 127
    %v11 = vpop.permute.xlu0 %10
    %vm12 = vcmask 7168
    %s13 = scalar_lea.vmem %s1, 1
    %14 = vst.msk [vmem:[%s13] ss:$4 sm:$0xf] %vm12, %v11
    %v15 = vld [vmem:[#allocation0] sm:$0xf]
    %16 = vrot.lane.b32.xlu0 %v15, 126
    %v17 = vpop.permute.xlu0 %16
    %vm18 = vcmask 7168
    %s19 = scalar_lea.vmem %s1, 2
    %20 = vst.msk [vmem:[%s19] ss:$4 sm:$0xf] %vm18, %v17
    %v21 = vld [vmem:[#allocation0] sm:$0xf]
    %22 = vrot.lane.b32.xlu0 %v21, 125
    %v23 = vpop.permute.xlu0 %22
    %vm24 = vcmask 7168
    %s25 = scalar_lea.vmem %s1, 3
    %26 = vst.msk [vmem:[%s25] ss:$4 sm:$0xf] %vm24, %v23

// kernel: tile.22
$region0: #{tile.22}
  #allocation0 [shape = 's32[1]{0}', space=sflag, size = 0x4, scoped, tag = 'scoped memory for tile.22']
  %s0 = inlined_call_operand.vmem [shape: f32[8], index: 0, kind: input, shape index: {}]
  %s1 = inlined_call_operand.vmem [shape: f32[4,8], index: 1, kind: output, shape index: {}]
  // Predicated region
  $region2: #{tile.22} parent=0 // pred_check
    _
  $region3: #{tile.22} parent=0 // pred_check_branch
    %3 = sbr.rel (0) target = $region5
  $region4: #{tile.22} parent=0 // pred_region
    _
  $region5: #{tile.22} parent=0 // pred_fallthru
    _
  %v4 = vld [vmem:[%s0] ss:$0 sm:$0xff]
  %5 = vst [vmem:[%s1] sm:$0xf] %v4

// kernel: tile.1
$region0: #{tile.1}
  %s0 = inlined_call_operand.vmem [shape: f32[4,8], index: 0, kind: input, shape index: {}]
  %s1 = inlined_call_operand.vmem [shape: f32[32,1], index: 1, kind: output, shape index: {}]
  $region1: #{tile.1} parent=0
    #allocation0 [shape = 'u8[4096]{0}', space=vmem, size = 0x1000, scoped, tag = 'scoped mem for input reshape']
    %s3 = ssub.s32 16, 1
    %v4 = vld [vmem:[%s0] sm:%s3]
    %5 = vst [vmem:[#allocation0] sm:%s3] %v4
    %v6 = vld [vmem:[#allocation0] sm:$0xf]
    %vm7 = vcmask 7168
    %8 = vst.msk [vmem:[%s1] ss:$8 sm:$0xf] %vm7, %v6
    %v9 = vld [vmem:[#allocation0] sm:$0xf]
    %10 = vrot.lane.b32.xlu0 %v9, 127
    %v11 = vpop.permute.xlu0 %10
    %vm12 = vcmask 7168
    %s13 = scalar_lea.vmem %s1, 1
    %14 = vst.msk [vmem:[%s13] ss:$8 sm:$0xf] %vm12, %v11
    %v15 = vld [vmem:[#allocation0] sm:$0xf]
    %16 = vrot.lane.b32.xlu0 %v15, 126
    %v17 = vpop.permute.xlu0 %16
    %vm18 = vcmask 7168
    %s19 = scalar_lea.vmem %s1, 2
    %20 = vst.msk [vmem:[%s19] ss:$8 sm:$0xf] %vm18, %v17
    %v21 = vld [vmem:[#allocation0] sm:$0xf]
    %22 = vrot.lane.b32.xlu0 %v21, 125
    %v23 = vpop.permute.xlu0 %22
    %vm24 = vcmask 7168
    %s25 = scalar_lea.vmem %s1, 3
    %26 = vst.msk [vmem:[%s25] ss:$8 sm:$0xf] %vm24, %v23
    %v27 = vld [vmem:[#allocation0] sm:$0xf]
    %28 = vrot.lane.b32.xlu0 %v27, 124
    %v29 = vpop.permute.xlu0 %28
    %vm30 = vcmask 7168
    %s31 = scalar_lea.vmem %s1, 4
    %32 = vst.msk [vmem:[%s31] ss:$8 sm:$0xf] %vm30, %v29
    %v33 = vld [vmem:[#allocation0] sm:$0xf]
    %34 = vrot.lane.b32.xlu0 %v33, 123
    %v35 = vpop.permute.xlu0 %34
    %vm36 = vcmask 7168
    %s37 = scalar_lea.vmem %s1, 5
    %38 = vst.msk [vmem:[%s37] ss:$8 sm:$0xf] %vm36, %v35
    %v39 = vld [vmem:[#allocation0] sm:$0xf]
    %40 = vrot.lane.b32.xlu0 %v39, 122
    %v41 = vpop.permute.xlu0 %40
    %vm42 = vcmask 7168
    %s43 = scalar_lea.vmem %s1, 6
    %44 = vst.msk [vmem:[%s43] ss:$8 sm:$0xf] %vm42, %v41
    %v45 = vld [vmem:[#allocation0] sm:$0xf]
    %46 = vrot.lane.b32.xlu0 %v45, 121
    %v47 = vpop.permute.xlu0 %46
    %vm48 = vcmask 7168
    %s49 = scalar_lea.vmem %s1, 7
    %50 = vst.msk [vmem:[%s49] ss:$8 sm:$0xf] %vm48, %v47

// kernel: decoder_bottleneck_forward.1
$region0: #{decoder_bottleneck_forward.1}
  #allocation0 [shape = 'u32[]', space=smem, size = 0x4, offset = 0x4, fixed_abs, tag = 'smem constant byte address 0x4 - core index']
  #allocation1 [shape = 'u32[72,128]{1,0:T(1,128)}', space=vmem, size = 0x9000, scoped, tag = 'internal scratch']
  %s0 = inlined_call_operand.vmem [shape: f32[2,16,256], index: 0, kind: input, shape index: {}]
  %s1 = inlined_call_operand.vmem [shape: f32[2,256], index: 1, kind: input, shape index: {}]
  %s2 = inlined_call_operand.vmem [shape: bf16[4,16], index: 2, kind: input, shape index: {}]
  %s3 = inlined_call_operand.vmem [shape: f32[4,1], index: 3, kind: input, shape index: {}]
  %s4 = inlined_call_operand.vmem [shape: bf16[4,16,4], index: 4, kind: input, shape index: {}]
  %s5 = inlined_call_operand.vmem [shape: f32[16,1], index: 5, kind: input, shape index: {}]
  %s6 = inlined_call_operand.vmem [shape: bf16[32,16], index: 6, kind: input, shape index: {}]
  %s7 = inlined_call_operand.vmem [shape: f32[32,1], index: 7, kind: input, shape index: {}]
  %s8 = inlined_call_operand.vmem [shape: f32[2,32,256], index: 8, kind: output, shape index: {}]
  %s9 = sld [smem:[#allocation0]]
  $region65: #{decoder_bottleneck_forward.1} parent=0
    _
  %s11 = ssub.s32 1, %s9
  %s12 = scalar_select 0, %s11, %s9
  loop: start=0, step=1, limit=4
  $region2: #{decoder_bottleneck_forward.1} parent=0 // loop_pre_header
    _
  $region3: #{decoder_bottleneck_forward.1} parent=0 // loop_header
    %s14 = sphi 0, %s18
    %p15 = scmp.ge.s32.totalorder %s14, 4
    %s24 = sphi 0, %s26
    %s27 = sphi 0, %s24
    %s28 = sphi 0, %s27
    %s44 = sphi 0, %s28
    %s48 = sphi 0, %s48
    %s50 = sphi 0, %s48
    %s51 = sphi 0, %s50
    %s65 = sphi 0, %s51
    %s69 = sphi 0, %s69
    %s71 = sphi 0, %s69
    %s72 = sphi 0, %s71
    %s86 = sphi 0, %s72
    %s90 = sphi 0, %s90
    %s92 = sphi 0, %s90
    %s93 = sphi 0, %s92
    %s107 = sphi 0, %s93
    %s111 = sphi 0, %s111
    %s113 = sphi 0, %s111
    %s114 = sphi 0, %s113
    %s128 = sphi 0, %s114
    %s132 = sphi 0, %s132
    %s134 = sphi 0, %s132
    %s135 = sphi 0, %s134
    %s149 = sphi 0, %s135
    %s153 = sphi 0, %s153
    %s155 = sphi 0, %s153
    %s156 = sphi 0, %s155
    %s170 = sphi 0, %s156
    %s174 = sphi 0, %s174
    %s176 = sphi 0, %s174
    %s177 = sphi 0, %s176
    %s191 = sphi 0, %s177
    %s197 = sphi 0, %s199
    %s200 = sphi 0, %s197
    %s201 = sphi 0, %s200
    %s217 = sphi 0, %s201
  $region4: #{decoder_bottleneck_forward.1} parent=0 // loop_header_branch
    %17 = sbr.rel (%p15) target = $region8
  $region5: #{decoder_bottleneck_forward.1} parent=0 // loop_body
    %s19 = ssub.s32 %s14, 1
    %s20 = ssub.s32 %s14, 2
    %s21 = sadd.s32 %s14, 1
    %s22 = ssub.s32 %s14, %s21
    %p23 = scmp.eq.s32.totalorder %s22, 0
    %s25 = sadd.s32 %s24, 1
    %s26 = scalar_select %p23, %s24, %s25
    %p29 = pneg %p23
    %p30 = scmp.eq.s32.totalorder %s14, 1
    %p31 = por %p29, %p30
    %p32 = scmp.ne.s32.totalorder %s24, %s27
    %p33 = scmp.eq.s32.totalorder %s14, 0
    %p34 = por %p32, %p33
    %p35 = scmp.ne.s32.totalorder %s24, %s27
    %p36 = scmp.eq.s32.totalorder %s19, 1
    %p37 = por %p35, %p36
    %p38 = scmp.ne.s32.totalorder %s27, %s28
    %p39 = scmp.eq.s32.totalorder %s19, 0
    %p40 = por %p38, %p39
    %p41 = scmp.ne.s32.totalorder %s27, %s28
    %p42 = scmp.eq.s32.totalorder %s20, 1
    %p43 = por %p41, %p42
    %p45 = scmp.ne.s32.totalorder %s28, %s44
    %p46 = scmp.eq.s32.totalorder %s20, 0
    %p47 = por %p45, %p46
    %s49 = sadd.s32 %s48, 1
    %p52 = scmp.eq.s32.totalorder %s14, 1
    %p53 = scmp.ne.s32.totalorder %s48, %s50
    %p54 = scmp.eq.s32.totalorder %s14, 0
    %p55 = por %p53, %p54
    %p56 = scmp.ne.s32.totalorder %s48, %s50
    %p57 = scmp.eq.s32.totalorder %s19, 1
    %p58 = por %p56, %p57
    %p59 = scmp.ne.s32.totalorder %s50, %s51
    %p60 = scmp.eq.s32.totalorder %s19, 0
    %p61 = por %p59, %p60
    %p62 = scmp.ne.s32.totalorder %s50, %s51
    %p63 = scmp.eq.s32.totalorder %s20, 1
    %p64 = por %p62, %p63
    %p66 = scmp.ne.s32.totalorder %s51, %s65
    %p67 = scmp.eq.s32.totalorder %s20, 0
    %p68 = por %p66, %p67
    %s70 = sadd.s32 %s69, 1
    %p73 = scmp.eq.s32.totalorder %s14, 1
    %p74 = scmp.ne.s32.totalorder %s69, %s71
    %p75 = scmp.eq.s32.totalorder %s14, 0
    %p76 = por %p74, %p75
    %p77 = scmp.ne.s32.totalorder %s69, %s71
    %p78 = scmp.eq.s32.totalorder %s19, 1
    %p79 = por %p77, %p78
    %p80 = scmp.ne.s32.totalorder %s71, %s72
    %p81 = scmp.eq.s32.totalorder %s19, 0
    %p82 = por %p80, %p81
    %p83 = scmp.ne.s32.totalorder %s71, %s72
    %p84 = scmp.eq.s32.totalorder %s20, 1
    %p85 = por %p83, %p84
    %p87 = scmp.ne.s32.totalorder %s72, %s86
    %p88 = scmp.eq.s32.totalorder %s20, 0
    %p89 = por %p87, %p88
    %s91 = sadd.s32 %s90, 1
    %p94 = scmp.eq.s32.totalorder %s14, 1
    %p95 = scmp.ne.s32.totalorder %s90, %s92
    %p96 = scmp.eq.s32.totalorder %s14, 0
    %p97 = por %p95, %p96
    %p98 = scmp.ne.s32.totalorder %s90, %s92
    %p99 = scmp.eq.s32.totalorder %s19, 1
    %p100 = por %p98, %p99
    %p101 = scmp.ne.s32.totalorder %s92, %s93
    %p102 = scmp.eq.s32.totalorder %s19, 0
    %p103 = por %p101, %p102
    %p104 = scmp.ne.s32.totalorder %s92, %s93
    %p105 = scmp.eq.s32.totalorder %s20, 1
    %p106 = por %p104, %p105
    %p108 = scmp.ne.s32.totalorder %s93, %s107
    %p109 = scmp.eq.s32.totalorder %s20, 0
    %p110 = por %p108, %p109
    %s112 = sadd.s32 %s111, 1
    %p115 = scmp.eq.s32.totalorder %s14, 1
    %p116 = scmp.ne.s32.totalorder %s111, %s113
    %p117 = scmp.eq.s32.totalorder %s14, 0
    %p118 = por %p116, %p117
    %p119 = scmp.ne.s32.totalorder %s111, %s113
    %p120 = scmp.eq.s32.totalorder %s19, 1
    %p121 = por %p119, %p120
    %p122 = scmp.ne.s32.totalorder %s113, %s114
    %p123 = scmp.eq.s32.totalorder %s19, 0
    %p124 = por %p122, %p123
    %p125 = scmp.ne.s32.totalorder %s113, %s114
    %p126 = scmp.eq.s32.totalorder %s20, 1
    %p127 = por %p125, %p126
    %p129 = scmp.ne.s32.totalorder %s114, %s128
    %p130 = scmp.eq.s32.totalorder %s20, 0
    %p131 = por %p129, %p130
    %s133 = sadd.s32 %s132, 1
    %p136 = scmp.eq.s32.totalorder %s14, 1
    %p137 = scmp.ne.s32.totalorder %s132, %s134
    %p138 = scmp.eq.s32.totalorder %s14, 0
    %p139 = por %p137, %p138
    %p140 = scmp.ne.s32.totalorder %s132, %s134
    %p141 = scmp.eq.s32.totalorder %s19, 1
    %p142 = por %p140, %p141
    %p143 = scmp.ne.s32.totalorder %s134, %s135
    %p144 = scmp.eq.s32.totalorder %s19, 0
    %p145 = por %p143, %p144
    %p146 = scmp.ne.s32.totalorder %s134, %s135
    %p147 = scmp.eq.s32.totalorder %s20, 1
    %p148 = por %p146, %p147
    %p150 = scmp.ne.s32.totalorder %s135, %s149
    %p151 = scmp.eq.s32.totalorder %s20, 0
    %p152 = por %p150, %p151
    %s154 = sadd.s32 %s153, 1
    %p157 = scmp.eq.s32.totalorder %s14, 1
    %p158 = scmp.ne.s32.totalorder %s153, %s155
    %p159 = scmp.eq.s32.totalorder %s14, 0
    %p160 = por %p158, %p159
    %p161 = scmp.ne.s32.totalorder %s153, %s155
    %p162 = scmp.eq.s32.totalorder %s19, 1
    %p163 = por %p161, %p162
    %p164 = scmp.ne.s32.totalorder %s155, %s156
    %p165 = scmp.eq.s32.totalorder %s19, 0
    %p166 = por %p164, %p165
    %p167 = scmp.ne.s32.totalorder %s155, %s156
    %p168 = scmp.eq.s32.totalorder %s20, 1
    %p169 = por %p167, %p168
    %p171 = scmp.ne.s32.totalorder %s156, %s170
    %p172 = scmp.eq.s32.totalorder %s20, 0
    %p173 = por %p171, %p172
    %s175 = sadd.s32 %s174, 1
    %p178 = scmp.eq.s32.totalorder %s14, 1
    %p179 = scmp.ne.s32.totalorder %s174, %s176
    %p180 = scmp.eq.s32.totalorder %s14, 0
    %p181 = por %p179, %p180
    %p182 = scmp.ne.s32.totalorder %s174, %s176
    %p183 = scmp.eq.s32.totalorder %s19, 1
    %p184 = por %p182, %p183
    %p185 = scmp.ne.s32.totalorder %s176, %s177
    %p186 = scmp.eq.s32.totalorder %s19, 0
    %p187 = por %p185, %p186
    %p188 = scmp.ne.s32.totalorder %s176, %s177
    %p189 = scmp.eq.s32.totalorder %s20, 1
    %p190 = por %p188, %p189
    %p192 = scmp.ne.s32.totalorder %s177, %s191
    %p193 = scmp.eq.s32.totalorder %s20, 0
    %p194 = por %p192, %p193
    %s195 = ssub.s32 %s14, %s21
    %p196 = scmp.eq.s32.totalorder %s195, 0
    %s198 = sadd.s32 %s197, 1
    %s199 = scalar_select %p196, %s197, %s198
    %p202 = pneg %p196
    %p203 = scmp.eq.s32.totalorder %s14, 1
    %p204 = por %p202, %p203
    %p205 = scmp.ne.s32.totalorder %s197, %s200
    %p206 = scmp.eq.s32.totalorder %s14, 0
    %p207 = por %p205, %p206
    %p208 = scmp.ne.s32.totalorder %s197, %s200
    %p209 = scmp.eq.s32.totalorder %s19, 1
    %p210 = por %p208, %p209
    %p211 = scmp.ne.s32.totalorder %s200, %s201
    %p212 = scmp.eq.s32.totalorder %s19, 0
    %p213 = por %p211, %p212
    %p214 = scmp.ne.s32.totalorder %s200, %s201
    %p215 = scmp.eq.s32.totalorder %s20, 1
    %p216 = por %p214, %p215
    %p218 = scmp.ne.s32.totalorder %s201, %s217
    %p219 = scmp.eq.s32.totalorder %s20, 0
    %p220 = por %p218, %p219
    %p221 = scmp.le.s32.totalorder 1, %s14
    %p222 = scmp.lt.s32.totalorder %s14, 3
    %p223 = pnand %p221, %p222
    %p224 = pneg %p223
    // Predicated region
    $region9: #{decoder_bottleneck_forward.1} parent=5 // pred_check
      _
    $region10: #{decoder_bottleneck_forward.1} parent=5 // pred_check_branch
      %226 = sbr.rel (%p223) target = $region12
    $region11: #{decoder_bottleneck_forward.1} parent=5 // pred_region
      %s227 = ssub.s32 %s14, 1
      // Predicated region
      $region13: #{decoder_bottleneck_forward.1} parent=11 // pred_check
        %p228 = pneg %p61
      $region14: #{decoder_bottleneck_forward.1} parent=11 // pred_check_branch
        %230 = sbr.rel (%p228) target = $region16
      $region15: #{decoder_bottleneck_forward.1} parent=11 // pred_region
        _
      $region16: #{decoder_bottleneck_forward.1} parent=11 // pred_fallthru
        _
      // Predicated region
      $region17: #{decoder_bottleneck_forward.1} parent=11 // pred_check
        %p231 = pneg %p82
      $region18: #{decoder_bottleneck_forward.1} parent=11 // pred_check_branch
        %233 = sbr.rel (%p231) target = $region20
      $region19: #{decoder_bottleneck_forward.1} parent=11 // pred_region
        _
      $region20: #{decoder_bottleneck_forward.1} parent=11 // pred_fallthru
        _
      // Predicated region
      $region21: #{decoder_bottleneck_forward.1} parent=11 // pred_check
        %p234 = pneg %p103
      $region22: #{decoder_bottleneck_forward.1} parent=11 // pred_check_branch
        %236 = sbr.rel (%p234) target = $region24
      $region23: #{decoder_bottleneck_forward.1} parent=11 // pred_region
        _
      $region24: #{decoder_bottleneck_forward.1} parent=11 // pred_fallthru
        _
      // Predicated region
      $region25: #{decoder_bottleneck_forward.1} parent=11 // pred_check
        %p237 = pneg %p124
      $region26: #{decoder_bottleneck_forward.1} parent=11 // pred_check_branch
        %239 = sbr.rel (%p237) target = $region28
      $region27: #{decoder_bottleneck_forward.1} parent=11 // pred_region
        _
      $region28: #{decoder_bottleneck_forward.1} parent=11 // pred_fallthru
        _
      // Predicated region
      $region29: #{decoder_bottleneck_forward.1} parent=11 // pred_check
        %p240 = pneg %p145
      $region30: #{decoder_bottleneck_forward.1} parent=11 // pred_check_branch
        %242 = sbr.rel (%p240) target = $region32
      $region31: #{decoder_bottleneck_forward.1} parent=11 // pred_region
        _
      $region32: #{decoder_bottleneck_forward.1} parent=11 // pred_fallthru
        _
      // Predicated region
      $region33: #{decoder_bottleneck_forward.1} parent=11 // pred_check
        %p243 = pneg %p166
      $region34: #{decoder_bottleneck_forward.1} parent=11 // pred_check_branch
        %245 = sbr.rel (%p243) target = $region36
      $region35: #{decoder_bottleneck_forward.1} parent=11 // pred_region
        _
      $region36: #{decoder_bottleneck_forward.1} parent=11 // pred_fallthru
        _
      // Predicated region
      $region37: #{decoder_bottleneck_forward.1} parent=11 // pred_check
        %p246 = pneg %p187
      $region38: #{decoder_bottleneck_forward.1} parent=11 // pred_check_branch
        %248 = sbr.rel (%p246) target = $region40
      $region39: #{decoder_bottleneck_forward.1} parent=11 // pred_region
        _
      $region40: #{decoder_bottleneck_forward.1} parent=11 // pred_fallthru
        _
    $region12: #{decoder_bottleneck_forward.1} parent=5 // pred_fallthru
      _
    %p249 = scmp.lt.s32.totalorder %s14, 2
    // Predicated region
    $region41: #{decoder_bottleneck_forward.1} parent=5 // pred_check
      %p250 = pneg %p249
    $region42: #{decoder_bottleneck_forward.1} parent=5 // pred_check_branch
      %252 = sbr.rel (%p250) target = $region44
    $region43: #{decoder_bottleneck_forward.1} parent=5 // pred_region
      // Predicated region
      $region45: #{decoder_bottleneck_forward.1} parent=43 // pred_check
        %p253 = pneg %p34
      $region46: #{decoder_bottleneck_forward.1} parent=43 // pred_check_branch
        %255 = sbr.rel (%p253) target = $region48
      $region47: #{decoder_bottleneck_forward.1} parent=43 // pred_region
        %p256 = scmp.lt.s32.totalorder %s14, 1
        %s257 = scalar_select %p256, %s14, 1
        %s258 = smul.addr %s257, 4
        %s259 = smul.addr %s258, 8
        %s260 = scalar_lea.vmem %s0, %s259
      $region48: #{decoder_bottleneck_forward.1} parent=43 // pred_fallthru
        _
    $region44: #{decoder_bottleneck_forward.1} parent=5 // pred_fallthru
      _
    %p261 = scmp.le.s32.totalorder 1, %s14
    %p262 = scmp.lt.s32.totalorder %s14, 3
    %p263 = pnand %p261, %p262
    %p264 = pneg %p263
    // Predicated region
    $region49: #{decoder_bottleneck_forward.1} parent=5 // pred_check
      _
    $region50: #{decoder_bottleneck_forward.1} parent=5 // pred_check_branch
      %266 = sbr.rel (%p263) target = $region52
    $region51: #{decoder_bottleneck_forward.1} parent=5 // pred_region
      %s267 = ssub.s32 %s14, 1
      %p268 = scmp.lt.s32.totalorder %s19, 1
      %s269 = scalar_select %p268, %s19, 1
      %s270 = smul.addr %s269, 4
      %s271 = smul.addr %s270, 8
      %s272 = scalar_lea.vmem %s0, %s271
      %p273 = pneg %p40
      %p274 = pneg %p37
      %p275 = pneg %p61
      %p276 = pneg %p58
      %p277 = pneg %p82
      %p278 = pneg %p79
      %p279 = pneg %p103
      %p280 = pneg %p100
      %p281 = pneg %p124
      %p282 = pneg %p121
      %p283 = pneg %p145
      %p284 = pneg %p142
      %p285 = pneg %p166
      %p286 = pneg %p163
      %p287 = pneg %p187
      %p288 = pneg %p184
      %p289 = pneg %p213
      %p290 = pneg %p210
      %p291 = scmp.lt.s32.totalorder %s19, 1
      %s292 = scalar_select %p291, %s19, 1
      %s293 = smul.addr %s292, 8
      %s294 = smul.addr %s293, 8
      %s295 = scalar_lea.vmem %s8, %s294
      %p296 = scmp.lt.s32.totalorder %s19, 1
      %s297 = scalar_select %p296, %s19, 1
      %s298 = smul.addr %s297, 4
      %s299 = smul.addr %s298, 8
      %s300 = scalar_lea.vmem %s0, %s299
      %p301 = scmp.lt.s32.totalorder %s19, 1
      %s302 = scalar_select %p301, %s19, 1
      %s303 = smul.addr %s302, 8
      %s304 = smul.addr %s303, 8
      %s305 = scalar_lea.vmem %s8, %s304
      %v307 = vld [vmem:[%s1] sm:$0xf]
      %vm308 = vcmp.ne.f32.partialorder %v307, 0.0
      %v309 = vsel %vm308, 1, 0
      %v310 = vrot.slane %v309, 7
      %v311 = vrot.slane %v310, 2
      %vm312 = vcmp.ne.s32.totalorder %v311, 0
      %vm313 = vmand %vm308, %vm312
      %v314 = vld [vmem:[%s2] sm:$0x3]
      %v315 = vld [vmem:[%s3] sm:$0xf]
      %v316 = vld [vmem:[%s4] sm:$0xf]
      %v317 = vld [vmem:[%s4 + $0x4] sm:$0xf]
      %s318 = scalar_lea.vmem %s4, 8
      %v319 = vld [vmem:[%s318] sm:$0xf]
      %v320 = vld [vmem:[%s318 + $0x4] sm:$0xf]
      %s321 = scalar_lea.vmem %s4, 16
      %v322 = vld [vmem:[%s321] sm:$0xf]
      %v323 = vld [vmem:[%s321 + $0x4] sm:$0xf]
      %s324 = scalar_lea.vmem %s4, 24
      %v325 = vld [vmem:[%s324] sm:$0xf]
      %v326 = vld [vmem:[%s324 + $0x4] sm:$0xf]
      %v327 = vld [vmem:[%s5] sm:$0xff]
      %v328 = vld [vmem:[%s5 + $0x8] sm:$0xff]
      %v329 = vld [vmem:[%s6] sm:$0xf]
      %v330 = vld [vmem:[%s6 + $0x4] sm:$0xf]
      %v331 = vld [vmem:[%s6 + $0x8] sm:$0xf]
      %v332 = vld [vmem:[%s6 + $0xc] sm:$0xf]
      %v333 = vld [vmem:[%s7] sm:$0xff]
      %v334 = vld [vmem:[%s7 + $0x8] sm:$0xff]
      %v335 = vld [vmem:[%s7 + $0x10] sm:$0xff]
      %v336 = vld [vmem:[%s7 + $0x18] sm:$0xff]
      %v337 = vld [vmem:[%s300] sm:$0xff]
      %v338 = vld [vmem:[%s300 + $0x8] sm:$0xff]
      %v339 = vld [vmem:[%s300 + $0x10] sm:$0xff]
      %v340 = vld [vmem:[%s300 + $0x18] sm:$0xff]
      %v341 = vpack.c.bf16 %v339, %v337
      %v342 = vpack.c.bf16 %v340, %v338
      %344 = vset.pattern.permute.xlu0 0
      %345 = vperm.xlu0 %344, %v315
      %v346 = vpop.permute.xlu0 %345
      %vm348 = vcmask 130048
      %v350 = vsel %vm348, %v314, 0
      %352 = vmatpush.bf16.msra.mxu0 0
      %353 = vmatpush.bf16.msra.mxu0 0
      %354 = vmatpush.bf16.msra.mxu0 0
      %355 = vmatpush.bf16.msra.mxu0 0
      %356 = vmatpush.bf16.msra.mxu0 0
      %357 = vmatpush.bf16.msra.mxu0 0
      %358 = vmatpush.bf16.msra.mxu0 0
      %359 = vmatpush.bf16.msra.mxu0 %v341
      %360 = vmatmul.bf16.gmra.mxu0 %v350
      %v361 = vpop.f32.mrf.mxu0
      %v362 = vadd.f32 %v346, %v361
      %v363 = vpop.f32.mrf.mxu0
      %364 = vdwg.mxu0
      %365 = vmatpush.bf16.msra.mxu0 0
      %366 = vmatpush.bf16.msra.mxu0 0
      %367 = vmatpush.bf16.msra.mxu0 0
      %368 = vmatpush.bf16.msra.mxu0 0
      %369 = vmatpush.bf16.msra.mxu0 0
      %370 = vmatpush.bf16.msra.mxu0 0
      %371 = vmatpush.bf16.msra.mxu0 0
      %372 = vmatpush.bf16.msra.mxu0 %v342
      %373 = vmatmul.bf16.gmra.mxu0 %v350
      %v374 = vpop.f32.mrf.mxu0
      %v375 = vadd.f32 %v346, %v374
      %v376 = vpop.f32.mrf.mxu0
      %377 = vdwg.mxu0
      %v378 = vmax.f32 %v362, 0.0
      %v379 = vmax.f32 %v375, 0.0
      %380 = vrot.lane.b32.xlu0 %v378, 127
      %v381 = vpop.permute.xlu0 %380
      %382 = vrot.lane.b32.xlu0 %v379, 127
      %v383 = vpop.permute.xlu0 %382
      %v384 = vlaneseq
      %v385 = vand.u32 %v384, 127
      %vm386 = vcmp.lt.s32.totalorder %v385, 127
      %v387 = vsel %vm386, %v381, %v383
      %v388 = vsel %vm386, %v383, %v381
      %v389 = vperm.slane %v309, 0
      %v390 = vperm.slane %v309, 2
      %v391 = vperm.slane %v389, 0
      %v392 = vperm.slane %v390, 0
      %vm393 = vcmp.eq.s32.totalorder %v391, 1
      %vm394 = vcmp.eq.s32.totalorder %v392, 1
      %v395 = vsel %vm393, %v387, 0.0
      %v396 = vsel %vm394, %v388, 0.0
      %397 = vrot.lane.b32.xlu0 %v378, 112
      %v398 = vpop.permute.xlu0 %397
      %399 = vrot.lane.b32.xlu0 %v379, 112
      %v400 = vpop.permute.xlu0 %399
      %vm401 = vcmp.lt.s32.totalorder %v385, 112
      %v402 = vsel %vm401, %v398, %v400
      %v403 = vsel %vm401, %v400, %v398
      %v404 = vperm.slane %v309, 1
      %v405 = vperm.slane %v309, 3
      %v406 = vperm.slane %v404, 1
      %v407 = vperm.slane %v405, 1
      %vm408 = vcmp.eq.s32.totalorder %v406, 1
      %vm409 = vcmp.eq.s32.totalorder %v407, 1
      %v410 = vsel %vm408, %v402, 0.0
      %v411 = vsel %vm409, %v403, 0.0
      %412 = vrot.lane.b32.xlu0 %v378, 111
      %v413 = vpop.permute.xlu0 %412
      %414 = vrot.lane.b32.xlu0 %v379, 111
      %v415 = vpop.permute.xlu0 %414
      %vm416 = vcmp.lt.s32.totalorder %v385, 111
      %v417 = vsel %vm416, %v413, %v415
      %v418 = vsel %vm416, %v415, %v413
      %v419 = vsel %vm313, 1, 0
      %v420 = vperm.slane %v419, 0
      %v421 = vperm.slane %v419, 2
      %v422 = vperm.slane %v420, 0
      %v423 = vperm.slane %v421, 0
      %vm424 = vcmp.eq.s32.totalorder %v422, 1
      %vm425 = vcmp.eq.s32.totalorder %v423, 1
      %v426 = vsel %vm424, %v417, 0.0
      %v427 = vsel %vm425, %v418, 0.0
      %v428 = vpack.c.bf16 %v378, %v378
      %v429 = vpack.c.bf16 %v379, %v379
      %v430 = vpack.c.bf16 %v395, %v395
      %v431 = vpack.c.bf16 %v396, %v396
      %v434 = vunpack.c.l.b16 %v319
      %v435 = vunpack.c.l.b16 %v320
      %v436 = vpack.c.b16 %v435, %v434
      %vm437 = vcmask 31744
      %v439 = vsel %vm437, %v436, 0
      %vm441 = vcmask 1041408
      %v443 = vsel %vm441, %v430, 0
      %v446 = vsel %vm441, %v431, 0
      %448 = vmatpush.bf16.msra.mxu0 0
      %449 = vmatpush.bf16.msra.mxu0 0
      %450 = vmatpush.bf16.msra.mxu0 0
      %451 = vmatpush.bf16.msra.mxu0 0
      %452 = vmatpush.bf16.msra.mxu0 0
      %453 = vmatpush.bf16.msra.mxu0 0
      %454 = vmatpush.bf16.msra.mxu0 0
      %455 = vmatpush.bf16.msra.mxu0 %v443
      %456 = vmatmul.bf16.gmra.mxu0 %v439
      %v457 = vpop.f32.mrf.mxu0
      %v458 = vadd.f32 0.0, %v457
      %v459 = vpop.f32.mrf.mxu0
      %v460 = vadd.f32 0.0, %v459
      %461 = vdwg.mxu0
      %462 = vmatpush.bf16.msra.mxu0 0
      %463 = vmatpush.bf16.msra.mxu0 0
      %464 = vmatpush.bf16.msra.mxu0 0
      %465 = vmatpush.bf16.msra.mxu0 0
      %466 = vmatpush.bf16.msra.mxu0 0
      %467 = vmatpush.bf16.msra.mxu0 0
      %468 = vmatpush.bf16.msra.mxu0 0
      %469 = vmatpush.bf16.msra.mxu0 %v446
      %470 = vmatmul.bf16.gmra.mxu0 %v439
      %v471 = vpop.f32.mrf.mxu0
      %v472 = vadd.f32 0.0, %v471
      %v473 = vpop.f32.mrf.mxu0
      %v474 = vadd.f32 0.0, %v473
      %475 = vdwg.mxu0
      %v478 = vunpack.c.l.b16 %v316
      %v479 = vunpack.c.l.b16 %v317
      %v480 = vpack.c.b16 %v479, %v478
      %v482 = vsel %vm437, %v480, 0
      %v485 = vsel %vm441, %v428, 0
      %v488 = vsel %vm441, %v429, 0
      %490 = vmatpush.bf16.msra.mxu0 0
      %491 = vmatpush.bf16.msra.mxu0 0
      %492 = vmatpush.bf16.msra.mxu0 0
      %493 = vmatpush.bf16.msra.mxu0 0
      %494 = vmatpush.bf16.msra.mxu0 0
      %495 = vmatpush.bf16.msra.mxu0 0
      %496 = vmatpush.bf16.msra.mxu0 0
      %497 = vmatpush.bf16.msra.mxu0 %v485
      %498 = vmatmul.bf16.gmra.mxu0 %v482
      %v499 = vpop.f32.mrf.mxu0
      %v500 = vadd.f32 %v458, %v499
      %v501 = vpop.f32.mrf.mxu0
      %v502 = vadd.f32 %v460, %v501
      %503 = vdwg.mxu0
      %504 = vmatpush.bf16.msra.mxu0 0
      %505 = vmatpush.bf16.msra.mxu0 0
      %506 = vmatpush.bf16.msra.mxu0 0
      %507 = vmatpush.bf16.msra.mxu0 0
      %508 = vmatpush.bf16.msra.mxu0 0
      %509 = vmatpush.bf16.msra.mxu0 0
      %510 = vmatpush.bf16.msra.mxu0 0
      %511 = vmatpush.bf16.msra.mxu0 %v488
      %512 = vmatmul.bf16.gmra.mxu0 %v482
      %v513 = vpop.f32.mrf.mxu0
      %v514 = vadd.f32 %v472, %v513
      %v515 = vpop.f32.mrf.mxu0
      %v516 = vadd.f32 %v474, %v515
      %517 = vdwg.mxu0
      %v518 = vpack.c.bf16 %v410, %v410
      %v519 = vpack.c.bf16 %v411, %v411
      %v522 = vunpack.c.l.b16 %v322
      %v523 = vunpack.c.l.b16 %v323
      %v524 = vpack.c.b16 %v523, %v522
      %v526 = vsel %vm437, %v524, 0
      %v529 = vsel %vm441, %v518, 0
      %v532 = vsel %vm441, %v519, 0
      %534 = vmatpush.bf16.msra.mxu0 0
      %535 = vmatpush.bf16.msra.mxu0 0
      %536 = vmatpush.bf16.msra.mxu0 0
      %537 = vmatpush.bf16.msra.mxu0 0
      %538 = vmatpush.bf16.msra.mxu0 0
      %539 = vmatpush.bf16.msra.mxu0 0
      %540 = vmatpush.bf16.msra.mxu0 0
      %541 = vmatpush.bf16.msra.mxu0 %v529
      %542 = vmatmul.bf16.gmra.mxu0 %v526
      %v543 = vpop.f32.mrf.mxu0
      %v544 = vadd.f32 0.0, %v543
      %v545 = vpop.f32.mrf.mxu0
      %v546 = vadd.f32 0.0, %v545
      %547 = vdwg.mxu0
      %548 = vmatpush.bf16.msra.mxu0 0
      %549 = vmatpush.bf16.msra.mxu0 0
      %550 = vmatpush.bf16.msra.mxu0 0
      %551 = vmatpush.bf16.msra.mxu0 0
      %552 = vmatpush.bf16.msra.mxu0 0
      %553 = vmatpush.bf16.msra.mxu0 0
      %554 = vmatpush.bf16.msra.mxu0 0
      %555 = vmatpush.bf16.msra.mxu0 %v532
      %556 = vmatmul.bf16.gmra.mxu0 %v526
      %v557 = vpop.f32.mrf.mxu0
      %v558 = vadd.f32 0.0, %v557
      %v559 = vpop.f32.mrf.mxu0
      %v560 = vadd.f32 0.0, %v559
      %561 = vdwg.mxu0
      %v562 = vadd.f32 %v500, %v544
      %v563 = vadd.f32 %v514, %v558
      %v564 = vadd.f32 %v502, %v546
      %v565 = vadd.f32 %v516, %v560
      %v566 = vpack.c.bf16 %v426, %v426
      %v567 = vpack.c.bf16 %v427, %v427
      %v570 = vunpack.c.l.b16 %v325
      %v571 = vunpack.c.l.b16 %v326
      %v572 = vpack.c.b16 %v571, %v570
      %v574 = vsel %vm437, %v572, 0
      %v577 = vsel %vm441, %v566, 0
      %v580 = vsel %vm441, %v567, 0
      %582 = vmatpush.bf16.msra.mxu0 0
      %583 = vmatpush.bf16.msra.mxu0 0
      %584 = vmatpush.bf16.msra.mxu0 0
      %585 = vmatpush.bf16.msra.mxu0 0
      %586 = vmatpush.bf16.msra.mxu0 0
      %587 = vmatpush.bf16.msra.mxu0 0
      %588 = vmatpush.bf16.msra.mxu0 0
      %589 = vmatpush.bf16.msra.mxu0 %v577
      %590 = vmatmul.bf16.gmra.mxu0 %v574
      %v591 = vpop.f32.mrf.mxu0
      %v592 = vadd.f32 0.0, %v591
      %v593 = vpop.f32.mrf.mxu0
      %v594 = vadd.f32 0.0, %v593
      %595 = vdwg.mxu0
      %596 = vmatpush.bf16.msra.mxu0 0
      %597 = vmatpush.bf16.msra.mxu0 0
      %598 = vmatpush.bf16.msra.mxu0 0
      %599 = vmatpush.bf16.msra.mxu0 0
      %600 = vmatpush.bf16.msra.mxu0 0
      %601 = vmatpush.bf16.msra.mxu0 0
      %602 = vmatpush.bf16.msra.mxu0 0
      %603 = vmatpush.bf16.msra.mxu0 %v580
      %604 = vmatmul.bf16.gmra.mxu0 %v574
      %v605 = vpop.f32.mrf.mxu0
      %v606 = vadd.f32 0.0, %v605
      %v607 = vpop.f32.mrf.mxu0
      %v608 = vadd.f32 0.0, %v607
      %609 = vdwg.mxu0
      %v610 = vadd.f32 %v562, %v592
      %v611 = vadd.f32 %v563, %v606
      %v612 = vadd.f32 %v564, %v594
      %v613 = vadd.f32 %v565, %v608
      %615 = vset.pattern.permute.xlu0 0
      %616 = vperm.xlu0 %615, %v327
      %v617 = vpop.permute.xlu0 %616
      %620 = vset.pattern.permute.xlu0 0
      %621 = vperm.xlu0 %620, %v328
      %v622 = vpop.permute.xlu0 %621
      %v624 = vadd.f32 %v610, %v617
      %v625 = vadd.f32 %v611, %v617
      %v626 = vadd.f32 %v612, %v622
      %v627 = vadd.f32 %v613, %v622
      %v628 = vmax.f32 %v624, 0.0
      %v629 = vmax.f32 %v625, 0.0
      %v630 = vmax.f32 %v626, 0.0
      %v631 = vmax.f32 %v627, 0.0
      %v632 = vpack.c.bf16 %v630, %v628
      %v633 = vpack.c.bf16 %v631, %v629
      %635 = vset.pattern.permute.xlu0 0
      %636 = vperm.xlu0 %635, %v333
      %v637 = vpop.permute.xlu0 %636
      %640 = vset.pattern.permute.xlu0 0
      %641 = vperm.xlu0 %640, %v334
      %v642 = vpop.permute.xlu0 %641
      %645 = vset.pattern.permute.xlu0 0
      %646 = vperm.xlu0 %645, %v335
      %v647 = vpop.permute.xlu0 %646
      %650 = vset.pattern.permute.xlu0 0
      %651 = vperm.xlu0 %650, %v336
      %v652 = vpop.permute.xlu0 %651
      %v658 = vunpack.c.l.b16 %v329
      %v659 = vunpack.c.l.b16 %v330
      %v660 = vunpack.c.l.b16 %v331
      %v661 = vunpack.c.l.b16 %v332
      %v662 = vpack.c.b16 %v659, %v658
      %v663 = vpack.c.b16 %v661, %v660
      %v665 = vsel %vm348, %v662, 0
      %v668 = vsel %vm348, %v663, 0
      %670 = vmatpush.bf16.msra.mxu0 0
      %671 = vmatpush.bf16.msra.mxu0 0
      %672 = vmatpush.bf16.msra.mxu0 0
      %673 = vmatpush.bf16.msra.mxu0 0
      %674 = vmatpush.bf16.msra.mxu0 0
      %675 = vmatpush.bf16.msra.mxu0 0
      %676 = vmatpush.bf16.msra.mxu0 0
      %677 = vmatpush.bf16.msra.mxu0 %v632
      %678 = vmatmul.bf16.gmra.mxu0 %v665
      %v679 = vpop.f32.mrf.mxu0
      %v680 = vadd.f32 %v637, %v679
      %v681 = vpop.f32.mrf.mxu0
      %v682 = vadd.f32 %v642, %v681
      %683 = vmatmul.bf16.gmra.mxu0 %v668
      %v684 = vpop.f32.mrf.mxu0
      %v685 = vadd.f32 %v647, %v684
      %v686 = vpop.f32.mrf.mxu0
      %v687 = vadd.f32 %v652, %v686
      %688 = vdwg.mxu0
      %689 = vmatpush.bf16.msra.mxu0 0
      %690 = vmatpush.bf16.msra.mxu0 0
      %691 = vmatpush.bf16.msra.mxu0 0
      %692 = vmatpush.bf16.msra.mxu0 0
      %693 = vmatpush.bf16.msra.mxu0 0
      %694 = vmatpush.bf16.msra.mxu0 0
      %695 = vmatpush.bf16.msra.mxu0 0
      %696 = vmatpush.bf16.msra.mxu0 %v633
      %697 = vmatmul.bf16.gmra.mxu0 %v665
      %v698 = vpop.f32.mrf.mxu0
      %v699 = vadd.f32 %v637, %v698
      %v700 = vpop.f32.mrf.mxu0
      %v701 = vadd.f32 %v642, %v700
      %702 = vmatmul.bf16.gmra.mxu0 %v668
      %v703 = vpop.f32.mrf.mxu0
      %v704 = vadd.f32 %v647, %v703
      %v705 = vpop.f32.mrf.mxu0
      %v706 = vadd.f32 %v652, %v705
      %707 = vdwg.mxu0
      %v708 = vmax.f32 %v680, 0.0
      %v709 = vmax.f32 %v699, 0.0
      %v710 = vmax.f32 %v682, 0.0
      %v711 = vmax.f32 %v701, 0.0
      %v712 = vmax.f32 %v685, 0.0
      %v713 = vmax.f32 %v704, 0.0
      %v714 = vmax.f32 %v687, 0.0
      %v715 = vmax.f32 %v706, 0.0
      %716 = vst [vmem:[%s305] sm:$0xff] %v708
      %717 = vst [vmem:[%s305 + $0x8] sm:$0xff] %v709
      %718 = vst [vmem:[%s305 + $0x10] sm:$0xff] %v710
      %719 = vst [vmem:[%s305 + $0x18] sm:$0xff] %v711
      %720 = vst [vmem:[%s305 + $0x20] sm:$0xff] %v712
      %721 = vst [vmem:[%s305 + $0x28] sm:$0xff] %v713
      %722 = vst [vmem:[%s305 + $0x30] sm:$0xff] %v714
      %723 = vst [vmem:[%s305 + $0x38] sm:$0xff] %v715
      %p724 = scmp.lt.s32.totalorder %s19, 1
      %s725 = scalar_select %p724, %s19, 1
      %s726 = smul.addr %s725, 8
      %s727 = smul.addr %s726, 8
      %s728 = scalar_lea.vmem %s8, %s727
      // Predicated region
      $region53: #{decoder_bottleneck_forward.1} parent=51 // pred_check
        %p729 = pneg %p210
      $region54: #{decoder_bottleneck_forward.1} parent=51 // pred_check_branch
        %731 = sbr.rel (%p729) target = $region56
      $region55: #{decoder_bottleneck_forward.1} parent=51 // pred_region
        _
      $region56: #{decoder_bottleneck_forward.1} parent=51 // pred_fallthru
        _
    $region52: #{decoder_bottleneck_forward.1} parent=5 // pred_fallthru
      _
    %p732 = scmp.le.s32.totalorder 2, %s14
    // Predicated region
    $region57: #{decoder_bottleneck_forward.1} parent=5 // pred_check
      %p733 = pneg %p732
    $region58: #{decoder_bottleneck_forward.1} parent=5 // pred_check_branch
      %735 = sbr.rel (%p733) target = $region60
    $region59: #{decoder_bottleneck_forward.1} parent=5 // pred_region
      %s736 = ssub.s32 %s14, 2
      // Predicated region
      $region61: #{decoder_bottleneck_forward.1} parent=59 // pred_check
        %p737 = pneg %p216
      $region62: #{decoder_bottleneck_forward.1} parent=59 // pred_check_branch
        %739 = sbr.rel (%p737) target = $region64
      $region63: #{decoder_bottleneck_forward.1} parent=59 // pred_region
        %p740 = scmp.lt.s32.totalorder %s20, 1
        %s741 = scalar_select %p740, %s20, 1
        %s742 = smul.addr %s741, 8
        %s743 = smul.addr %s742, 8
        %s744 = scalar_lea.vmem %s8, %s743
      $region64: #{decoder_bottleneck_forward.1} parent=59 // pred_fallthru
        _
    $region60: #{decoder_bottleneck_forward.1} parent=5 // pred_fallthru
      _
  $region6: #{decoder_bottleneck_forward.1} parent=0 // loop_footer
    %s18 = sadd.s32 1, %s14
  $region7: #{decoder_bottleneck_forward.1} parent=0 // loop_footer_branch
    %13 = sbr.rel target = $region3
  $region8: #{decoder_bottleneck_forward.1} parent=0 // loop_exit
    _

</llo_original>
